<compile_context>
chip_gen: v6e
topology: v6e:2x2x1
jax: 0.10.0
libtpu: 0.0.40
codegen_flags: <defaults>
</compile_context>

<pallas_src>
import jax
import jax.numpy as jnp
from jax.experimental import pallas as pl
from jax.experimental.pallas import tpu as pltpu


def _add3_kernel(a_ref, b_ref, c_ref, o_ref):
    # x262 = x261 + (x246 + x232) -- pure elementwise, runs on the VPU.
    o_ref[...] = a_ref[...] + b_ref[...] + c_ref[...]


# Widest-first lane widths tried so the reshape to 2-D is a free bitcast and
# the output stores are lane-dense (unmasked vst).
_LANE_CANDIDATES = (2048, 1024, 512, 256, 128)

# Arrays at or below this size (per array) go through as one full-array block.
_SINGLE_BLOCK_MAX_BYTES = 1 << 20          # 1 MiB

# Tiled path: ~2 MiB per array per tile, independent of dtype.
# 4 streams x 2 buffers x 2 MiB = 16 MiB VMEM.
_TILE_TARGET_BYTES = 2 << 20

# Explicit scoped-VMEM budget: well above our 8-16 MiB working set, below
# v7x's 64 MiB physical VMEM, and decoupled from the 16/32/32 MiB defaults.
_VMEM_LIMIT_BYTES = 40 * 1024 * 1024


def _sublane_multiple(dtype):
    itemsize = jnp.dtype(dtype).itemsize
    return {4: 8, 2: 16, 1: 32}.get(itemsize, 8)


def _pallas_add3_2d(a2, b2, c2, tile_rows, grid, semantics, cost):
    rows, lanes = a2.shape
    spec = pl.BlockSpec((tile_rows, lanes), lambda i: (i, 0))
    return pl.pallas_call(
        _add3_kernel,
        out_shape=jax.ShapeDtypeStruct((rows, lanes), a2.dtype),
        grid_spec=pltpu.PrefetchScalarGridSpec(
            num_scalar_prefetch=0,
            grid=grid,
            in_specs=[spec, spec, spec],
            out_specs=spec,
        ),
        compiler_params=pltpu.CompilerParams(
            dimension_semantics=semantics,
            vmem_limit_bytes=_VMEM_LIMIT_BYTES,
        ),
        cost_estimate=cost,
    )(a2, b2, c2)


def add3(x246, x232, x261):
    assert x246.shape == x232.shape == x261.shape
    assert x246.dtype == x232.dtype == x261.dtype
    orig_shape = x246.shape
    dtype = x246.dtype
    itemsize = jnp.dtype(dtype).itemsize
    total = x246.size
    sub = _sublane_multiple(dtype)

    # 1) Pick a lane width that divides `total`: reshape is then a free
    #    bitcast -> no padding, no slice-back, no extra HBM passes.
    lanes = next((w for w in _LANE_CANDIDATES if total % w == 0), None)
    padded = total
    if lanes is None:
        # Rare fallback: pad flat arrays only up to one (sublane x 128) chunk.
        lanes = 128
        chunk = sub * lanes
        padded = ((total + chunk - 1) // chunk) * chunk
    rows = padded // lanes

    cost = pl.CostEstimate(
        flops=2 * padded,
        transcendentals=0,
        bytes_accessed=4 * padded * itemsize,  # 3 reads + 1 write
    )

    def as2d(x):
        flat = x.reshape(-1)
        if padded != total:
            flat = jnp.pad(flat, (0, padded - total))
        return flat.reshape(rows, lanes)

    a2, b2, c2 = as2d(x246), as2d(x232), as2d(x261)

    if padded * itemsize <= _SINGLE_BLOCK_MAX_BYTES:
        # Truly tiny (module shape is 245 KiB/array): one full-array block.
        out2 = _pallas_add3_2d(a2, b2, c2, rows, (1,), ("arbitrary",), cost)
    else:
        # Row-tiled path: ~2 MiB per array per tile regardless of dtype.
        tile_rows = max(sub,
                        (_TILE_TARGET_BYTES // (lanes * itemsize)) // sub * sub)
        if tile_rows >= rows:
            # One (full-extent) block; no point in a grid.
            out2 = _pallas_add3_2d(a2, b2, c2, rows, (1,), ("arbitrary",), cost)
        else:
            # Last block may be partial; Pallas masks out-of-bounds stores,
            # which is safe for a pure elementwise op.
            grid = (pl.cdiv(rows, tile_rows),)
            out2 = _pallas_add3_2d(a2, b2, c2, tile_rows, grid,
                                   ("parallel",), cost)

    if padded != total:
        return out2.reshape(-1)[:total].reshape(orig_shape)
    return out2.reshape(orig_shape)


if __name__ == "__main__":
    key = jax.random.PRNGKey(0)
    k1, k2, k3 = jax.random.split(key, 3)

    # Exact module shape: (1, 80, 28, 28) -> 62720 elems = 245 * 256
    # (no-pad single-block fast path).
    shape = (1, 80, 28, 28)
    x232 = jax.random.normal(k1, shape, dtype=jnp.float32)
    x246 = jax.random.normal(k2, shape, dtype=jnp.float32)
    x261 = jax.random.normal(k3, shape, dtype=jnp.float32)

    out = add3(x246, x232, x261)
    jax.block_until_ready(out)

    ref = x261 + (x246 + x232)
    assert out.shape == shape and out.dtype == ref.dtype
    assert jnp.allclose(out, ref, atol=1e-6, rtol=1e-6)

    # Tiled no-pad path, multi-block parallel grid (rows=512, lanes=2048).
    shape_b = (1, 64, 128, 128)
    b1 = jax.random.normal(k1, shape_b, dtype=jnp.float32)
    b2 = jax.random.normal(k2, shape_b, dtype=jnp.float32)
    b3 = jax.random.normal(k3, shape_b, dtype=jnp.float32)
    out_b = add3(b1, b2, b3)
    jax.block_until_ready(out_b)
    assert jnp.allclose(out_b, b3 + (b1 + b2), atol=1e-6, rtol=1e-6)

    # Tiled no-pad path with a (row-aligned) partial last block.
    shape_c = (1, 66, 64, 128)   # 540672 elems = 264 * 2048 -> grid of 2
    c1 = jax.random.normal(k1, shape_c, dtype=jnp.float32)
    c2 = jax.random.normal(k2, shape_c, dtype=jnp.float32)
    c3 = jax.random.normal(k3, shape_c, dtype=jnp.float32)
    out_c = add3(c1, c2, c3)
    jax.block_until_ready(out_c)
    assert jnp.allclose(out_c, c3 + (c1 + c2), atol=1e-6, rtol=1e-6)

    # Pad-fallback path (element count not divisible by any lane width).
    shape_d = (3, 5, 7, 11)
    d1 = jax.random.normal(k1, shape_d, dtype=jnp.float32)
    d2 = jax.random.normal(k2, shape_d, dtype=jnp.float32)
    d3 = jax.random.normal(k3, shape_d, dtype=jnp.float32)
    out_d = add3(d1, d2, d3)
    jax.block_until_ready(out_d)
    assert jnp.allclose(out_d, d3 + (d1 + d2), atol=1e-6, rtol=1e-6)

    print("KERNEL_OK")
</pallas_src>

<mosaic_0001>
module attributes {stable_mosaic.version = 11 : i64} {
  func.func @_add3_kernel(%arg0: i32, %arg1: memref<245x256xf32, #tpu.memory_space<vmem>>, %arg2: memref<245x256xf32, #tpu.memory_space<vmem>>, %arg3: memref<245x256xf32, #tpu.memory_space<vmem>>, %arg4: memref<245x256xf32, #tpu.memory_space<vmem>>) attributes {dimension_semantics = [#tpu.dimension_semantics<arbitrary>], iteration_bounds = array<i64: 1>, scalar_prefetch = 0 : i64, scratch_operands = 0 : i64, tpu.core_type = #tpu.core_type<tc>, window_params = [{transform_indices = @transform_0, window_bounds = array<i64: 245, 256>}, {transform_indices = @transform_1, window_bounds = array<i64: 245, 256>}, {transform_indices = @transform_2, window_bounds = array<i64: 245, 256>}, {transform_indices = @transform_3, window_bounds = array<i64: 245, 256>}]} {
    %c0 = arith.constant 0 : index
    %c0_0 = arith.constant 0 : index
    %0 = vector.load %arg1[%c0, %c0_0] : memref<245x256xf32, #tpu.memory_space<vmem>>, vector<245x256xf32>
    %c0_1 = arith.constant 0 : index
    %c0_2 = arith.constant 0 : index
    %1 = vector.load %arg2[%c0_1, %c0_2] : memref<245x256xf32, #tpu.memory_space<vmem>>, vector<245x256xf32>
    %2 = arith.addf %0, %1 : vector<245x256xf32>
    %c0_3 = arith.constant 0 : index
    %c0_4 = arith.constant 0 : index
    %3 = vector.load %arg3[%c0_3, %c0_4] : memref<245x256xf32, #tpu.memory_space<vmem>>, vector<245x256xf32>
    %4 = arith.addf %2, %3 : vector<245x256xf32>
    %c0_5 = arith.constant 0 : index
    %c0_6 = arith.constant 0 : index
    %5 = vector.load %arg4[%c0_5, %c0_6] : memref<245x256xf32, #tpu.memory_space<vmem>>, vector<245x256xf32>
    tpu.vector_store %arg4[%c0_5, %c0_6], %4 {strides = array<i32>} : memref<245x256xf32, #tpu.memory_space<vmem>>, vector<245x256xf32>,
    return
  }
  func.func @transform_0(%arg0: i32) -> (i32, i32) {
    %c0_i32 = arith.constant 0 : i32
    %c0_i32_0 = arith.constant 0 : i32
    return %arg0, %c0_i32 : i32, i32
  }
  func.func @transform_1(%arg0: i32) -> (i32, i32) {
    %c0_i32 = arith.constant 0 : i32
    %c0_i32_0 = arith.constant 0 : i32
    return %arg0, %c0_i32 : i32, i32
  }
  func.func @transform_2(%arg0: i32) -> (i32, i32) {
    %c0_i32 = arith.constant 0 : i32
    %c0_i32_0 = arith.constant 0 : i32
    return %arg0, %c0_i32 : i32, i32
  }
  func.func @transform_3(%arg0: i32) -> (i32, i32) {
    %c0_i32 = arith.constant 0 : i32
    %c0_i32_0 = arith.constant 0 : i32
    return %arg0, %c0_i32 : i32, i32
  }
}

</mosaic_0001>

<llo_original>
// kernel: tpu_custom_call.1
$region0: #{tpu_custom_call.1}
  #allocation0 [shape = 'u32[]', space=smem, size = 0x4, offset = 0x4, fixed_abs, tag = 'smem constant byte address 0x4 - core index']
  #allocation1 [shape = 'u32[144,128]{1,0:T(1,128)}', space=vmem, size = 0x12000, scoped, tag = 'internal scratch']
  %s0 = inlined_call_operand.hbm [shape: f32[245,256], index: 0, kind: input, shape index: {}]
  %s1 = inlined_call_operand.hbm [shape: f32[245,256], index: 1, kind: input, shape index: {}]
  %s2 = inlined_call_operand.hbm [shape: f32[245,256], index: 2, kind: input, shape index: {}]
  %s3 = inlined_call_operand.hbm [shape: f32[245,256], index: 3, kind: output, shape index: {}]
  %s4 = sld [smem:[#allocation0]]
  $region34: #{tpu_custom_call.1} parent=0
    _
  %s6 = ssub.s32 1, %s4
  %s7 = scalar_select 0, %s6, %s4
  $region1: #{tpu_custom_call.1} parent=0
    #allocation2 [shape = 'u8[253952]{0}', space=vmem, size = 0x3e000, scoped, tag = 'input window, operand 0, single buffered']
    #allocation3 [shape = 's32[1]{0}', space=sflag, size = 0x4, scoped, tag = 'scoped memory for tpu_custom_call.1']
    #allocation4 [shape = 's32[1]{0}', space=sflag, size = 0x4, scoped, tag = 'scoped memory for tpu_custom_call.1']
    #allocation5 [shape = 'u8[253952]{0}', space=vmem, size = 0x3e000, scoped, tag = 'input window, operand 1, single buffered']
    #allocation6 [shape = 's32[1]{0}', space=sflag, size = 0x4, scoped, tag = 'scoped memory for tpu_custom_call.1']
    #allocation7 [shape = 'u8[253952]{0}', space=vmem, size = 0x3e000, scoped, tag = 'input window, operand 2, single buffered']
    #allocation8 [shape = 'u8[253952]{0}', space=vmem, size = 0x3e000, scoped, tag = 'output window, operand 0, single buffered']
    %8 = vsyncpa [#allocation3], 0
    %9 = vsyncpa [#allocation6], 0
    %10 = vsyncpa [#allocation4], 0
    // Predicated region
    $region2: #{tpu_custom_call.1} parent=1 // pred_check
      _
    $region3: #{tpu_custom_call.1} parent=1 // pred_check_branch
      %12 = sbr.rel (0) target = $region5
    $region4: #{tpu_custom_call.1} parent=1 // pred_region
      %s14 = ssub.s32 7936, 7936
      %15 = vsyncadd [#allocation3], %s14
      %s16 = sshll.u32 [#allocation2], 4
      %s17 = int_to_ptr.vmem [resolvable:$true] %s16
      %22 = dma.hbm_to_vmem [thread:$0]  %s0, 7936, %s17, [#allocation3], 256, 256, 16
    $region5: #{tpu_custom_call.1} parent=1 // pred_fallthru
      _
    // Predicated region
    $region6: #{tpu_custom_call.1} parent=1 // pred_check
      _
    $region7: #{tpu_custom_call.1} parent=1 // pred_check_branch
      %24 = sbr.rel (0) target = $region9
    $region8: #{tpu_custom_call.1} parent=1 // pred_region
      %s26 = ssub.s32 7936, 7936
      %27 = vsyncadd [#allocation6], %s26
      %s28 = sshll.u32 [#allocation5], 4
      %s29 = int_to_ptr.vmem [resolvable:$true] %s28
      %34 = dma.hbm_to_vmem [thread:$0]  %s1, 7936, %s29, [#allocation6], 256, 256, 16
    $region9: #{tpu_custom_call.1} parent=1 // pred_fallthru
      _
    // Predicated region
    $region10: #{tpu_custom_call.1} parent=1 // pred_check
      _
    $region11: #{tpu_custom_call.1} parent=1 // pred_check_branch
      %36 = sbr.rel (0) target = $region13
    $region12: #{tpu_custom_call.1} parent=1 // pred_region
      %s38 = ssub.s32 7936, 7936
      %39 = vsyncadd [#allocation6], %s38
      %s40 = sshll.u32 [#allocation7], 4
      %s41 = int_to_ptr.vmem [resolvable:$true] %s40
      %46 = dma.hbm_to_vmem [thread:$0]  %s2, 7936, %s41, [#allocation6], 256, 256, 16
    $region13: #{tpu_custom_call.1} parent=1 // pred_fallthru
      _
    // Predicated region
    $region14: #{tpu_custom_call.1} parent=1 // pred_check
      _
    $region15: #{tpu_custom_call.1} parent=1 // pred_check_branch
      %48 = sbr.rel (0) target = $region17
    $region16: #{tpu_custom_call.1} parent=1 // pred_region
      %49 = dma.done [#allocation3], 7936
    $region17: #{tpu_custom_call.1} parent=1 // pred_fallthru
      _
    // Predicated region
    $region18: #{tpu_custom_call.1} parent=1 // pred_check
      _
    $region19: #{tpu_custom_call.1} parent=1 // pred_check_branch
      %51 = sbr.rel (0) target = $region21
    $region20: #{tpu_custom_call.1} parent=1 // pred_region
      %52 = dma.done [#allocation6], 7936
    $region21: #{tpu_custom_call.1} parent=1 // pred_fallthru
      _
    // Predicated region
    $region22: #{tpu_custom_call.1} parent=1 // pred_check
      _
    $region23: #{tpu_custom_call.1} parent=1 // pred_check_branch
      %54 = sbr.rel (0) target = $region25
    $region24: #{tpu_custom_call.1} parent=1 // pred_region
      %55 = dma.done [#allocation6], 7936
    $region25: #{tpu_custom_call.1} parent=1 // pred_fallthru
      _
    %v56 = vld [vmem:[#allocation2] sm:$0xff]
    %v57 = vld [vmem:[#allocation2 + $0x8] sm:$0xff]
    %v58 = vld [vmem:[#allocation2 + $0x10] sm:$0xff]
    %v59 = vld [vmem:[#allocation2 + $0x18] sm:$0xff]
    %v60 = vld [vmem:[#allocation2 + $0x20] sm:$0xff]
    %v61 = vld [vmem:[#allocation2 + $0x28] sm:$0xff]
    %v62 = vld [vmem:[#allocation2 + $0x30] sm:$0xff]
    %v63 = vld [vmem:[#allocation2 + $0x38] sm:$0xff]
    %v64 = vld [vmem:[#allocation2 + $0x40] sm:$0xff]
    %v65 = vld [vmem:[#allocation2 + $0x48] sm:$0xff]
    %v66 = vld [vmem:[#allocation2 + $0x50] sm:$0xff]
    %v67 = vld [vmem:[#allocation2 + $0x58] sm:$0xff]
    %v68 = vld [vmem:[#allocation2 + $0x60] sm:$0xff]
    %v69 = vld [vmem:[#allocation2 + $0x68] sm:$0xff]
    %v70 = vld [vmem:[#allocation2 + $0x70] sm:$0xff]
    %v71 = vld [vmem:[#allocation2 + $0x78] sm:$0xff]
    %v72 = vld [vmem:[#allocation2 + $0x80] sm:$0xff]
    %v73 = vld [vmem:[#allocation2 + $0x88] sm:$0xff]
    %v74 = vld [vmem:[#allocation2 + $0x90] sm:$0xff]
    %v75 = vld [vmem:[#allocation2 + $0x98] sm:$0xff]
    %v76 = vld [vmem:[#allocation2 + $0xa0] sm:$0xff]
    %v77 = vld [vmem:[#allocation2 + $0xa8] sm:$0xff]
    %v78 = vld [vmem:[#allocation2 + $0xb0] sm:$0xff]
    %v79 = vld [vmem:[#allocation2 + $0xb8] sm:$0xff]
    %v80 = vld [vmem:[#allocation2 + $0xc0] sm:$0xff]
    %v81 = vld [vmem:[#allocation2 + $0xc8] sm:$0xff]
    %v82 = vld [vmem:[#allocation2 + $0xd0] sm:$0xff]
    %v83 = vld [vmem:[#allocation2 + $0xd8] sm:$0xff]
    %v84 = vld [vmem:[#allocation2 + $0xe0] sm:$0xff]
    %v85 = vld [vmem:[#allocation2 + $0xe8] sm:$0xff]
    %v86 = vld [vmem:[#allocation2 + $0xf0] sm:$0xff]
    %v87 = vld [vmem:[#allocation2 + $0xf8] sm:$0xff]
    %v88 = vld [vmem:[#allocation2 + $0x100] sm:$0xff]
    %v89 = vld [vmem:[#allocation2 + $0x108] sm:$0xff]
    %v90 = vld [vmem:[#allocation2 + $0x110] sm:$0xff]
    %v91 = vld [vmem:[#allocation2 + $0x118] sm:$0xff]
    %v92 = vld [vmem:[#allocation2 + $0x120] sm:$0xff]
    %v93 = vld [vmem:[#allocation2 + $0x128] sm:$0xff]
    %v94 = vld [vmem:[#allocation2 + $0x130] sm:$0xff]
    %v95 = vld [vmem:[#allocation2 + $0x138] sm:$0xff]
    %v96 = vld [vmem:[#allocation2 + $0x140] sm:$0xff]
    %v97 = vld [vmem:[#allocation2 + $0x148] sm:$0xff]
    %v98 = vld [vmem:[#allocation2 + $0x150] sm:$0xff]
    %v99 = vld [vmem:[#allocation2 + $0x158] sm:$0xff]
    %v100 = vld [vmem:[#allocation2 + $0x160] sm:$0xff]
    %v101 = vld [vmem:[#allocation2 + $0x168] sm:$0xff]
    %v102 = vld [vmem:[#allocation2 + $0x170] sm:$0xff]
    %v103 = vld [vmem:[#allocation2 + $0x178] sm:$0xff]
    %v104 = vld [vmem:[#allocation2 + $0x180] sm:$0xff]
    %v105 = vld [vmem:[#allocation2 + $0x188] sm:$0xff]
    %v106 = vld [vmem:[#allocation2 + $0x190] sm:$0xff]
    %v107 = vld [vmem:[#allocation2 + $0x198] sm:$0xff]
    %v108 = vld [vmem:[#allocation2 + $0x1a0] sm:$0xff]
    %v109 = vld [vmem:[#allocation2 + $0x1a8] sm:$0xff]
    %v110 = vld [vmem:[#allocation2 + $0x1b0] sm:$0xff]
    %v111 = vld [vmem:[#allocation2 + $0x1b8] sm:$0xff]
    %v112 = vld [vmem:[#allocation2 + $0x1c0] sm:$0xff]
    %v113 = vld [vmem:[#allocation2 + $0x1c8] sm:$0xff]
    %v114 = vld [vmem:[#allocation2 + $0x1d0] sm:$0xff]
    %v115 = vld [vmem:[#allocation2 + $0x1d8] sm:$0xff]
    %v116 = vld [vmem:[#allocation2 + $0x1e0] sm:$0x1f]
    %v117 = vld [vmem:[#allocation2 + $0x1e8] sm:$0x1f]
    %v118 = vld [vmem:[#allocation5] sm:$0xff]
    %v119 = vld [vmem:[#allocation5 + $0x8] sm:$0xff]
    %v120 = vld [vmem:[#allocation5 + $0x10] sm:$0xff]
    %v121 = vld [vmem:[#allocation5 + $0x18] sm:$0xff]
    %v122 = vld [vmem:[#allocation5 + $0x20] sm:$0xff]
    %v123 = vld [vmem:[#allocation5 + $0x28] sm:$0xff]
    %v124 = vld [vmem:[#allocation5 + $0x30] sm:$0xff]
    %v125 = vld [vmem:[#allocation5 + $0x38] sm:$0xff]
    %v126 = vld [vmem:[#allocation5 + $0x40] sm:$0xff]
    %v127 = vld [vmem:[#allocation5 + $0x48] sm:$0xff]
    %v128 = vld [vmem:[#allocation5 + $0x50] sm:$0xff]
    %v129 = vld [vmem:[#allocation5 + $0x58] sm:$0xff]
    %v130 = vld [vmem:[#allocation5 + $0x60] sm:$0xff]
    %v131 = vld [vmem:[#allocation5 + $0x68] sm:$0xff]
    %v132 = vld [vmem:[#allocation5 + $0x70] sm:$0xff]
    %v133 = vld [vmem:[#allocation5 + $0x78] sm:$0xff]
    %v134 = vld [vmem:[#allocation5 + $0x80] sm:$0xff]
    %v135 = vld [vmem:[#allocation5 + $0x88] sm:$0xff]
    %v136 = vld [vmem:[#allocation5 + $0x90] sm:$0xff]
    %v137 = vld [vmem:[#allocation5 + $0x98] sm:$0xff]
    %v138 = vld [vmem:[#allocation5 + $0xa0] sm:$0xff]
    %v139 = vld [vmem:[#allocation5 + $0xa8] sm:$0xff]
    %v140 = vld [vmem:[#allocation5 + $0xb0] sm:$0xff]
    %v141 = vld [vmem:[#allocation5 + $0xb8] sm:$0xff]
    %v142 = vld [vmem:[#allocation5 + $0xc0] sm:$0xff]
    %v143 = vld [vmem:[#allocation5 + $0xc8] sm:$0xff]
    %v144 = vld [vmem:[#allocation5 + $0xd0] sm:$0xff]
    %v145 = vld [vmem:[#allocation5 + $0xd8] sm:$0xff]
    %v146 = vld [vmem:[#allocation5 + $0xe0] sm:$0xff]
    %v147 = vld [vmem:[#allocation5 + $0xe8] sm:$0xff]
    %v148 = vld [vmem:[#allocation5 + $0xf0] sm:$0xff]
    %v149 = vld [vmem:[#allocation5 + $0xf8] sm:$0xff]
    %v150 = vld [vmem:[#allocation5 + $0x100] sm:$0xff]
    %v151 = vld [vmem:[#allocation5 + $0x108] sm:$0xff]
    %v152 = vld [vmem:[#allocation5 + $0x110] sm:$0xff]
    %v153 = vld [vmem:[#allocation5 + $0x118] sm:$0xff]
    %v154 = vld [vmem:[#allocation5 + $0x120] sm:$0xff]
    %v155 = vld [vmem:[#allocation5 + $0x128] sm:$0xff]
    %v156 = vld [vmem:[#allocation5 + $0x130] sm:$0xff]
    %v157 = vld [vmem:[#allocation5 + $0x138] sm:$0xff]
    %v158 = vld [vmem:[#allocation5 + $0x140] sm:$0xff]
    %v159 = vld [vmem:[#allocation5 + $0x148] sm:$0xff]
    %v160 = vld [vmem:[#allocation5 + $0x150] sm:$0xff]
    %v161 = vld [vmem:[#allocation5 + $0x158] sm:$0xff]
    %v162 = vld [vmem:[#allocation5 + $0x160] sm:$0xff]
    %v163 = vld [vmem:[#allocation5 + $0x168] sm:$0xff]
    %v164 = vld [vmem:[#allocation5 + $0x170] sm:$0xff]
    %v165 = vld [vmem:[#allocation5 + $0x178] sm:$0xff]
    %v166 = vld [vmem:[#allocation5 + $0x180] sm:$0xff]
    %v167 = vld [vmem:[#allocation5 + $0x188] sm:$0xff]
    %v168 = vld [vmem:[#allocation5 + $0x190] sm:$0xff]
    %v169 = vld [vmem:[#allocation5 + $0x198] sm:$0xff]
    %v170 = vld [vmem:[#allocation5 + $0x1a0] sm:$0xff]
    %v171 = vld [vmem:[#allocation5 + $0x1a8] sm:$0xff]
    %v172 = vld [vmem:[#allocation5 + $0x1b0] sm:$0xff]
    %v173 = vld [vmem:[#allocation5 + $0x1b8] sm:$0xff]
    %v174 = vld [vmem:[#allocation5 + $0x1c0] sm:$0xff]
    %v175 = vld [vmem:[#allocation5 + $0x1c8] sm:$0xff]
    %v176 = vld [vmem:[#allocation5 + $0x1d0] sm:$0xff]
    %v177 = vld [vmem:[#allocation5 + $0x1d8] sm:$0xff]
    %v178 = vld [vmem:[#allocation5 + $0x1e0] sm:$0x1f]
    %v179 = vld [vmem:[#allocation5 + $0x1e8] sm:$0x1f]
    %v180 = vadd.f32 %v56, %v118
    %v181 = vadd.f32 %v57, %v119
    %v182 = vadd.f32 %v58, %v120
    %v183 = vadd.f32 %v59, %v121
    %v184 = vadd.f32 %v60, %v122
    %v185 = vadd.f32 %v61, %v123
    %v186 = vadd.f32 %v62, %v124
    %v187 = vadd.f32 %v63, %v125
    %v188 = vadd.f32 %v64, %v126
    %v189 = vadd.f32 %v65, %v127
    %v190 = vadd.f32 %v66, %v128
    %v191 = vadd.f32 %v67, %v129
    %v192 = vadd.f32 %v68, %v130
    %v193 = vadd.f32 %v69, %v131
    %v194 = vadd.f32 %v70, %v132
    %v195 = vadd.f32 %v71, %v133
    %v196 = vadd.f32 %v72, %v134
    %v197 = vadd.f32 %v73, %v135
    %v198 = vadd.f32 %v74, %v136
    %v199 = vadd.f32 %v75, %v137
    %v200 = vadd.f32 %v76, %v138
    %v201 = vadd.f32 %v77, %v139
    %v202 = vadd.f32 %v78, %v140
    %v203 = vadd.f32 %v79, %v141
    %v204 = vadd.f32 %v80, %v142
    %v205 = vadd.f32 %v81, %v143
    %v206 = vadd.f32 %v82, %v144
    %v207 = vadd.f32 %v83, %v145
    %v208 = vadd.f32 %v84, %v146
    %v209 = vadd.f32 %v85, %v147
    %v210 = vadd.f32 %v86, %v148
    %v211 = vadd.f32 %v87, %v149
    %v212 = vadd.f32 %v88, %v150
    %v213 = vadd.f32 %v89, %v151
    %v214 = vadd.f32 %v90, %v152
    %v215 = vadd.f32 %v91, %v153
    %v216 = vadd.f32 %v92, %v154
    %v217 = vadd.f32 %v93, %v155
    %v218 = vadd.f32 %v94, %v156
    %v219 = vadd.f32 %v95, %v157
    %v220 = vadd.f32 %v96, %v158
    %v221 = vadd.f32 %v97, %v159
    %v222 = vadd.f32 %v98, %v160
    %v223 = vadd.f32 %v99, %v161
    %v224 = vadd.f32 %v100, %v162
    %v225 = vadd.f32 %v101, %v163
    %v226 = vadd.f32 %v102, %v164
    %v227 = vadd.f32 %v103, %v165
    %v228 = vadd.f32 %v104, %v166
    %v229 = vadd.f32 %v105, %v167
    %v230 = vadd.f32 %v106, %v168
    %v231 = vadd.f32 %v107, %v169
    %v232 = vadd.f32 %v108, %v170
    %v233 = vadd.f32 %v109, %v171
    %v234 = vadd.f32 %v110, %v172
    %v235 = vadd.f32 %v111, %v173
    %v236 = vadd.f32 %v112, %v174
    %v237 = vadd.f32 %v113, %v175
    %v238 = vadd.f32 %v114, %v176
    %v239 = vadd.f32 %v115, %v177
    %v240 = vadd.f32 %v116, %v178
    %v241 = vadd.f32 %v117, %v179
    %v242 = vld [vmem:[#allocation7] sm:$0xff]
    %v243 = vld [vmem:[#allocation7 + $0x8] sm:$0xff]
    %v244 = vld [vmem:[#allocation7 + $0x10] sm:$0xff]
    %v245 = vld [vmem:[#allocation7 + $0x18] sm:$0xff]
    %v246 = vld [vmem:[#allocation7 + $0x20] sm:$0xff]
    %v247 = vld [vmem:[#allocation7 + $0x28] sm:$0xff]
    %v248 = vld [vmem:[#allocation7 + $0x30] sm:$0xff]
    %v249 = vld [vmem:[#allocation7 + $0x38] sm:$0xff]
    %v250 = vld [vmem:[#allocation7 + $0x40] sm:$0xff]
    %v251 = vld [vmem:[#allocation7 + $0x48] sm:$0xff]
    %v252 = vld [vmem:[#allocation7 + $0x50] sm:$0xff]
    %v253 = vld [vmem:[#allocation7 + $0x58] sm:$0xff]
    %v254 = vld [vmem:[#allocation7 + $0x60] sm:$0xff]
    %v255 = vld [vmem:[#allocation7 + $0x68] sm:$0xff]
    %v256 = vld [vmem:[#allocation7 + $0x70] sm:$0xff]
    %v257 = vld [vmem:[#allocation7 + $0x78] sm:$0xff]
    %v258 = vld [vmem:[#allocation7 + $0x80] sm:$0xff]
    %v259 = vld [vmem:[#allocation7 + $0x88] sm:$0xff]
    %v260 = vld [vmem:[#allocation7 + $0x90] sm:$0xff]
    %v261 = vld [vmem:[#allocation7 + $0x98] sm:$0xff]
    %v262 = vld [vmem:[#allocation7 + $0xa0] sm:$0xff]
    %v263 = vld [vmem:[#allocation7 + $0xa8] sm:$0xff]
    %v264 = vld [vmem:[#allocation7 + $0xb0] sm:$0xff]
    %v265 = vld [vmem:[#allocation7 + $0xb8] sm:$0xff]
    %v266 = vld [vmem:[#allocation7 + $0xc0] sm:$0xff]
    %v267 = vld [vmem:[#allocation7 + $0xc8] sm:$0xff]
    %v268 = vld [vmem:[#allocation7 + $0xd0] sm:$0xff]
    %v269 = vld [vmem:[#allocation7 + $0xd8] sm:$0xff]
    %v270 = vld [vmem:[#allocation7 + $0xe0] sm:$0xff]
    %v271 = vld [vmem:[#allocation7 + $0xe8] sm:$0xff]
    %v272 = vld [vmem:[#allocation7 + $0xf0] sm:$0xff]
    %v273 = vld [vmem:[#allocation7 + $0xf8] sm:$0xff]
    %v274 = vld [vmem:[#allocation7 + $0x100] sm:$0xff]
    %v275 = vld [vmem:[#allocation7 + $0x108] sm:$0xff]
    %v276 = vld [vmem:[#allocation7 + $0x110] sm:$0xff]
    %v277 = vld [vmem:[#allocation7 + $0x118] sm:$0xff]
    %v278 = vld [vmem:[#allocation7 + $0x120] sm:$0xff]
    %v279 = vld [vmem:[#allocation7 + $0x128] sm:$0xff]
    %v280 = vld [vmem:[#allocation7 + $0x130] sm:$0xff]
    %v281 = vld [vmem:[#allocation7 + $0x138] sm:$0xff]
    %v282 = vld [vmem:[#allocation7 + $0x140] sm:$0xff]
    %v283 = vld [vmem:[#allocation7 + $0x148] sm:$0xff]
    %v284 = vld [vmem:[#allocation7 + $0x150] sm:$0xff]
    %v285 = vld [vmem:[#allocation7 + $0x158] sm:$0xff]
    %v286 = vld [vmem:[#allocation7 + $0x160] sm:$0xff]
    %v287 = vld [vmem:[#allocation7 + $0x168] sm:$0xff]
    %v288 = vld [vmem:[#allocation7 + $0x170] sm:$0xff]
    %v289 = vld [vmem:[#allocation7 + $0x178] sm:$0xff]
    %v290 = vld [vmem:[#allocation7 + $0x180] sm:$0xff]
    %v291 = vld [vmem:[#allocation7 + $0x188] sm:$0xff]
    %v292 = vld [vmem:[#allocation7 + $0x190] sm:$0xff]
    %v293 = vld [vmem:[#allocation7 + $0x198] sm:$0xff]
    %v294 = vld [vmem:[#allocation7 + $0x1a0] sm:$0xff]
    %v295 = vld [vmem:[#allocation7 + $0x1a8] sm:$0xff]
    %v296 = vld [vmem:[#allocation7 + $0x1b0] sm:$0xff]
    %v297 = vld [vmem:[#allocation7 + $0x1b8] sm:$0xff]
    %v298 = vld [vmem:[#allocation7 + $0x1c0] sm:$0xff]
    %v299 = vld [vmem:[#allocation7 + $0x1c8] sm:$0xff]
    %v300 = vld [vmem:[#allocation7 + $0x1d0] sm:$0xff]
    %v301 = vld [vmem:[#allocation7 + $0x1d8] sm:$0xff]
    %v302 = vld [vmem:[#allocation7 + $0x1e0] sm:$0x1f]
    %v303 = vld [vmem:[#allocation7 + $0x1e8] sm:$0x1f]
    %v304 = vadd.f32 %v180, %v242
    %v305 = vadd.f32 %v181, %v243
    %v306 = vadd.f32 %v182, %v244
    %v307 = vadd.f32 %v183, %v245
    %v308 = vadd.f32 %v184, %v246
    %v309 = vadd.f32 %v185, %v247
    %v310 = vadd.f32 %v186, %v248
    %v311 = vadd.f32 %v187, %v249
    %v312 = vadd.f32 %v188, %v250
    %v313 = vadd.f32 %v189, %v251
    %v314 = vadd.f32 %v190, %v252
    %v315 = vadd.f32 %v191, %v253
    %v316 = vadd.f32 %v192, %v254
    %v317 = vadd.f32 %v193, %v255
    %v318 = vadd.f32 %v194, %v256
    %v319 = vadd.f32 %v195, %v257
    %v320 = vadd.f32 %v196, %v258
    %v321 = vadd.f32 %v197, %v259
    %v322 = vadd.f32 %v198, %v260
    %v323 = vadd.f32 %v199, %v261
    %v324 = vadd.f32 %v200, %v262
    %v325 = vadd.f32 %v201, %v263
    %v326 = vadd.f32 %v202, %v264
    %v327 = vadd.f32 %v203, %v265
    %v328 = vadd.f32 %v204, %v266
    %v329 = vadd.f32 %v205, %v267
    %v330 = vadd.f32 %v206, %v268
    %v331 = vadd.f32 %v207, %v269
    %v332 = vadd.f32 %v208, %v270
    %v333 = vadd.f32 %v209, %v271
    %v334 = vadd.f32 %v210, %v272
    %v335 = vadd.f32 %v211, %v273
    %v336 = vadd.f32 %v212, %v274
    %v337 = vadd.f32 %v213, %v275
    %v338 = vadd.f32 %v214, %v276
    %v339 = vadd.f32 %v215, %v277
    %v340 = vadd.f32 %v216, %v278
    %v341 = vadd.f32 %v217, %v279
    %v342 = vadd.f32 %v218, %v280
    %v343 = vadd.f32 %v219, %v281
    %v344 = vadd.f32 %v220, %v282
    %v345 = vadd.f32 %v221, %v283
    %v346 = vadd.f32 %v222, %v284
    %v347 = vadd.f32 %v223, %v285
    %v348 = vadd.f32 %v224, %v286
    %v349 = vadd.f32 %v225, %v287
    %v350 = vadd.f32 %v226, %v288
    %v351 = vadd.f32 %v227, %v289
    %v352 = vadd.f32 %v228, %v290
    %v353 = vadd.f32 %v229, %v291
    %v354 = vadd.f32 %v230, %v292
    %v355 = vadd.f32 %v231, %v293
    %v356 = vadd.f32 %v232, %v294
    %v357 = vadd.f32 %v233, %v295
    %v358 = vadd.f32 %v234, %v296
    %v359 = vadd.f32 %v235, %v297
    %v360 = vadd.f32 %v236, %v298
    %v361 = vadd.f32 %v237, %v299
    %v362 = vadd.f32 %v238, %v300
    %v363 = vadd.f32 %v239, %v301
    %v364 = vadd.f32 %v240, %v302
    %v365 = vadd.f32 %v241, %v303
    %366 = vst [vmem:[#allocation8] sm:$0xff] %v304
    %367 = vst [vmem:[#allocation8 + $0x8] sm:$0xff] %v305
    %368 = vst [vmem:[#allocation8 + $0x10] sm:$0xff] %v306
    %369 = vst [vmem:[#allocation8 + $0x18] sm:$0xff] %v307
    %370 = vst [vmem:[#allocation8 + $0x20] sm:$0xff] %v308
    %371 = vst [vmem:[#allocation8 + $0x28] sm:$0xff] %v309
    %372 = vst [vmem:[#allocation8 + $0x30] sm:$0xff] %v310
    %373 = vst [vmem:[#allocation8 + $0x38] sm:$0xff] %v311
    %374 = vst [vmem:[#allocation8 + $0x40] sm:$0xff] %v312
    %375 = vst [vmem:[#allocation8 + $0x48] sm:$0xff] %v313
    %376 = vst [vmem:[#allocation8 + $0x50] sm:$0xff] %v314
    %377 = vst [vmem:[#allocation8 + $0x58] sm:$0xff] %v315
    %378 = vst [vmem:[#allocation8 + $0x60] sm:$0xff] %v316
    %379 = vst [vmem:[#allocation8 + $0x68] sm:$0xff] %v317
    %380 = vst [vmem:[#allocation8 + $0x70] sm:$0xff] %v318
    %381 = vst [vmem:[#allocation8 + $0x78] sm:$0xff] %v319
    %382 = vst [vmem:[#allocation8 + $0x80] sm:$0xff] %v320
    %383 = vst [vmem:[#allocation8 + $0x88] sm:$0xff] %v321
    %384 = vst [vmem:[#allocation8 + $0x90] sm:$0xff] %v322
    %385 = vst [vmem:[#allocation8 + $0x98] sm:$0xff] %v323
    %386 = vst [vmem:[#allocation8 + $0xa0] sm:$0xff] %v324
    %387 = vst [vmem:[#allocation8 + $0xa8] sm:$0xff] %v325
    %388 = vst [vmem:[#allocation8 + $0xb0] sm:$0xff] %v326
    %389 = vst [vmem:[#allocation8 + $0xb8] sm:$0xff] %v327
    %390 = vst [vmem:[#allocation8 + $0xc0] sm:$0xff] %v328
    %391 = vst [vmem:[#allocation8 + $0xc8] sm:$0xff] %v329
    %392 = vst [vmem:[#allocation8 + $0xd0] sm:$0xff] %v330
    %393 = vst [vmem:[#allocation8 + $0xd8] sm:$0xff] %v331
    %394 = vst [vmem:[#allocation8 + $0xe0] sm:$0xff] %v332
    %395 = vst [vmem:[#allocation8 + $0xe8] sm:$0xff] %v333
    %396 = vst [vmem:[#allocation8 + $0xf0] sm:$0xff] %v334
    %397 = vst [vmem:[#allocation8 + $0xf8] sm:$0xff] %v335
    %398 = vst [vmem:[#allocation8 + $0x100] sm:$0xff] %v336
    %399 = vst [vmem:[#allocation8 + $0x108] sm:$0xff] %v337
    %400 = vst [vmem:[#allocation8 + $0x110] sm:$0xff] %v338
    %401 = vst [vmem:[#allocation8 + $0x118] sm:$0xff] %v339
    %402 = vst [vmem:[#allocation8 + $0x120] sm:$0xff] %v340
    %403 = vst [vmem:[#allocation8 + $0x128] sm:$0xff] %v341
    %404 = vst [vmem:[#allocation8 + $0x130] sm:$0xff] %v342
    %405 = vst [vmem:[#allocation8 + $0x138] sm:$0xff] %v343
    %406 = vst [vmem:[#allocation8 + $0x140] sm:$0xff] %v344
    %407 = vst [vmem:[#allocation8 + $0x148] sm:$0xff] %v345
    %408 = vst [vmem:[#allocation8 + $0x150] sm:$0xff] %v346
    %409 = vst [vmem:[#allocation8 + $0x158] sm:$0xff] %v347
    %410 = vst [vmem:[#allocation8 + $0x160] sm:$0xff] %v348
    %411 = vst [vmem:[#allocation8 + $0x168] sm:$0xff] %v349
    %412 = vst [vmem:[#allocation8 + $0x170] sm:$0xff] %v350
    %413 = vst [vmem:[#allocation8 + $0x178] sm:$0xff] %v351
    %414 = vst [vmem:[#allocation8 + $0x180] sm:$0xff] %v352
    %415 = vst [vmem:[#allocation8 + $0x188] sm:$0xff] %v353
    %416 = vst [vmem:[#allocation8 + $0x190] sm:$0xff] %v354
    %417 = vst [vmem:[#allocation8 + $0x198] sm:$0xff] %v355
    %418 = vst [vmem:[#allocation8 + $0x1a0] sm:$0xff] %v356
    %419 = vst [vmem:[#allocation8 + $0x1a8] sm:$0xff] %v357
    %420 = vst [vmem:[#allocation8 + $0x1b0] sm:$0xff] %v358
    %421 = vst [vmem:[#allocation8 + $0x1b8] sm:$0xff] %v359
    %422 = vst [vmem:[#allocation8 + $0x1c0] sm:$0xff] %v360
    %423 = vst [vmem:[#allocation8 + $0x1c8] sm:$0xff] %v361
    %424 = vst [vmem:[#allocation8 + $0x1d0] sm:$0xff] %v362
    %425 = vst [vmem:[#allocation8 + $0x1d8] sm:$0xff] %v363
    %426 = vst [vmem:[#allocation8 + $0x1e0] sm:$0x1f] %v364
    %427 = vst [vmem:[#allocation8 + $0x1e8] sm:$0x1f] %v365
    // Predicated region
    $region26: #{tpu_custom_call.1} parent=1 // pred_check
      _
    $region27: #{tpu_custom_call.1} parent=1 // pred_check_branch
      %429 = sbr.rel (0) target = $region29
    $region28: #{tpu_custom_call.1} parent=1 // pred_region
      %s431 = ssub.s32 7936, 7936
      %432 = vsyncadd [#allocation4], %s431
      %s433 = sshll.u32 [#allocation8], 4
      %s434 = int_to_ptr.vmem [resolvable:$true] %s433
      %439 = dma.vmem_to_hbm [thread:$0]  %s434, 7936, %s3, [#allocation4], 256, 256, 16
    $region29: #{tpu_custom_call.1} parent=1 // pred_fallthru
      _
    // Predicated region
    $region30: #{tpu_custom_call.1} parent=1 // pred_check
      _
    $region31: #{tpu_custom_call.1} parent=1 // pred_check_branch
      %441 = sbr.rel (0) target = $region33
    $region32: #{tpu_custom_call.1} parent=1 // pred_region
      %442 = dma.done [#allocation4], 7936
    $region33: #{tpu_custom_call.1} parent=1 // pred_fallthru
      _
    %443 = vsyncpa [#allocation3], 1
    %444 = vsyncpa [#allocation6], 1
    %445 = vsyncpa [#allocation4], 1

</llo_original>
